<compile_context>
chip_gen: v7x
topology: tpu7x:2x2x1
jax: 0.10.0
libtpu: 0.0.40
codegen_flags: <defaults>
</compile_context>

<pallas_src>
import jax
import jax.numpy as jnp
from jax.experimental import pallas as pl
from jax.experimental.pallas import tpu as pltpu


def _round_up(x, m):
    return ((x + m - 1) // m) * m


def _classifier_kernel(x_ref, w_ref, b_ref, logits_ref):
    # x_ref:      (TM, in_size)   streamed input tile (VMEM)
    # w_ref:      (in_size, TN)   pre-transposed weight tile (resident when TN == classes)
    # b_ref:      (1, TN)         bias tile (f32)
    # logits_ref: (TM, TN)        output tile, dtype == input dtype
    acc = jnp.dot(x_ref[...], w_ref[...], preferred_element_type=jnp.float32)
    logits_ref[...] = (acc + b_ref[...]).astype(logits_ref.dtype)


def _chip_profile():
    """Chip-aware tiling/VMEM budgets. Conservative defaults if the kind is unknown."""
    kind = ""
    try:
        kind = jax.devices()[0].device_kind.lower()
    except Exception:
        pass
    if "v7" in kind or "7x" in kind:
        # 64 MiB physical VMEM per TC, 2 TensorCores per chip -> want >= 2 N-tiles.
        return dict(tm_target=512, tile_budget=24 << 20, vmem_cap=48 << 20, two_tc=True)
    if "v6" in kind:
        # 128 MiB physical VMEM: larger tiles amortize the ~0.35us per-grid-step overhead.
        return dict(tm_target=1024, tile_budget=64 << 20, vmem_cap=100 << 20, two_tc=False)
    if "v5" in kind:
        # 128 MiB physical but only a 16 MiB scoped default -> raise vmem_limit explicitly.
        return dict(tm_target=512, tile_budget=48 << 20, vmem_cap=100 << 20, two_tc=False)
    return dict(tm_target=512, tile_budget=24 << 20, vmem_cap=48 << 20, two_tc=False)


def _pallas_linear(x, w_t, b2, out_dtype):
    """logits = x @ w_t + b2 via a tiled Pallas kernel. x:(N,K), w_t:(K,C), b2:(1,C)."""
    n, in_size = x.shape
    classes_p = w_t.shape[1]
    prof = _chip_profile()
    x_bytes = x.dtype.itemsize
    w_bytes = w_t.dtype.itemsize
    out_bytes = jnp.dtype(out_dtype).itemsize

    # ---- classes (weight-column / output) tiling --------------------------------------------
    # Keep the whole weight resident when it fits comfortably; otherwise stream 128-aligned
    # column tiles over a second (parallel) grid axis.
    weight_budget = prof["tile_budget"] // 2
    if classes_p <= 128 or 2 * in_size * classes_p * w_bytes <= weight_budget:
        tn = classes_p
    else:
        tn = min(classes_p,
                 max(128, ((weight_budget // (2 * in_size * w_bytes)) // 128) * 128))
    weight_resident = tn == classes_p

    # ---- N tiling (VMEM-budgeted, chip-aware) ------------------------------------------------
    per_row = 2 * in_size * x_bytes + 2 * tn * out_bytes          # 2-deep pipelined x + out rows
    tm = max(8, min(prof["tm_target"], ((prof["tile_budget"] // max(per_row, 1)) // 8) * 8))
    if prof["two_tc"] and n > 16:
        # Ensure >= 2 tiles so the "parallel" N axis can shard across v7x's 2 TensorCores.
        tm = min(tm, _round_up(pl.cdiv(n, 2), 8))
    tm = min(tm, _round_up(n, 8))

    grid = (pl.cdiv(n, tm), pl.cdiv(classes_p, tn))

    w_buffers = 1 if weight_resident else 2
    vmem_need = (2 * tm * in_size * x_bytes + 2 * tm * tn * out_bytes
                 + w_buffers * in_size * tn * w_bytes + 2 * tn * 4)
    vmem_limit = int(min(max(vmem_need + (4 << 20), 32 << 20), prof["vmem_cap"]))

    def call(single_buffer_resident):
        resident_kw = ({"pipeline_mode": pl.Buffered(1)} if single_buffer_resident else {})
        return pl.pallas_call(
            _classifier_kernel,
            out_shape=jax.ShapeDtypeStruct((n, classes_p), out_dtype),
            grid=grid,
            in_specs=[
                pl.BlockSpec((tm, in_size), lambda i, j: (i, 0)),              # streamed over N
                pl.BlockSpec((in_size, tn), lambda i, j: (0, j), **resident_kw),  # weight
                pl.BlockSpec((1, tn), lambda i, j: (0, j), **resident_kw),        # bias
            ],
            out_specs=pl.BlockSpec((tm, tn), lambda i, j: (i, j)),
            compiler_params=pltpu.CompilerParams(
                dimension_semantics=("parallel", "parallel"),
                vmem_limit_bytes=vmem_limit,
            ),
        )(x, w_t, b2)

    if weight_resident:
        # Constant index_map -> single-buffer the resident weight/bias (halves their VMEM cost).
        try:
            return call(True)
        except Exception:
            # Fallback for jax versions where pipeline_mode / Buffered(1) is not accepted.
            return call(False)
    return call(False)


def instance_classifier_forward(features, weight, bias, *, use_pallas=None):
    """InstanceClassifier.forward: returns (features, features @ weight.T + bias).

    features: (N, in_size); weight: (classes, in_size); bias: (classes,).
    """
    n, in_size = features.shape
    classes = weight.shape[0]

    if use_pallas is None:
        # Below ~1 MiB of streamed x the custom-call + per-grid-step overhead dominates; let XLA
        # fuse the tiny matmul instead.
        use_pallas = n * in_size * features.dtype.itemsize >= (1 << 20)

    if not use_pallas:
        logits = (jnp.dot(features, weight.T, preferred_element_type=jnp.float32)
                  + bias.astype(jnp.float32)).astype(features.dtype)
        return features, logits

    # Lane-align a large, misaligned classes dim (avoids masked vst partial stores); tiny heads
    # stay unpadded since their output traffic is negligible.
    classes_p = _round_up(classes, 128) if (classes > 128 and classes % 128) else classes

    w_t = jnp.transpose(weight)                          # one-time (in_size, classes) transpose
    b2 = bias.astype(jnp.float32).reshape(1, classes)
    if classes_p != classes:
        w_t = jnp.pad(w_t, ((0, 0), (0, classes_p - classes)))
        b2 = jnp.pad(b2, ((0, 0), (0, classes_p - classes)))

    logits = _pallas_linear(features, w_t, b2, features.dtype)
    if classes_p != classes:
        logits = logits[:, :classes]

    # Feature pass-through handled in the wrapper — zero extra HBM traffic.
    return features, logits


if __name__ == "__main__":
    key = jax.random.PRNGKey(0)

    def make_inputs(k, n, in_size, classes, dtype):
        kx, kw, kb = jax.random.split(k, 3)
        bound = 1.0 / (in_size ** 0.5)
        x = jax.random.normal(kx, (n, in_size), dtype=jnp.float32).astype(dtype)
        w = jax.random.uniform(kw, (classes, in_size), minval=-bound, maxval=bound,
                               dtype=jnp.float32).astype(dtype)
        b = jax.random.uniform(kb, (classes,), minval=-bound, maxval=bound,
                               dtype=jnp.float32).astype(dtype)
        return x, w, b

    def ref_logits(x, w, b):
        return (jnp.dot(x, w.T, preferred_element_type=jnp.float32)
                + b.astype(jnp.float32)).astype(x.dtype)

    k1, k2, k3 = jax.random.split(key, 3)

    # 1) Toy shapes matching the module config (N x in_size): auto-dispatch takes the fused XLA
    #    fast path; we also force the Pallas kernel once on the same shapes.
    x, w, b = make_inputs(k1, 16, 32, 8, jnp.float32)
    f_out, c_fast = instance_classifier_forward(x, w, b)
    _, c_pallas = instance_classifier_forward(x, w, b, use_pallas=True)
    jax.block_until_ready((f_out, c_fast, c_pallas))
    assert f_out.shape == (16, 32) and jnp.array_equal(f_out, x), "feature pass-through mismatch"
    assert jnp.allclose(c_fast, ref_logits(x, w, b), atol=1e-4, rtol=1e-4)
    assert jnp.allclose(c_pallas, ref_logits(x, w, b), atol=1e-4, rtol=1e-4)

    # 2) Medium f32 case with ragged N (exercises the cdiv grid + masked last block, no padding).
    x, w, b = make_inputs(k2, 1030, 256, 10, jnp.float32)
    f_out, c_out = instance_classifier_forward(x, w, b)       # >= 1 MiB -> Pallas path
    jax.block_until_ready((f_out, c_out))
    assert c_out.shape == (1030, 10) and c_out.dtype == jnp.float32
    assert jnp.allclose(c_out, ref_logits(x, w, b), atol=1e-3, rtol=1e-3), "f32 logits mismatch"

    # 3) bf16 in -> bf16 out (f32 MXU accumulation inside the kernel).
    x, w, b = make_inputs(k3, 520, 256, 8, jnp.bfloat16)
    _, c_bf16 = instance_classifier_forward(x, w, b, use_pallas=True)
    jax.block_until_ready(c_bf16)
    assert c_bf16.dtype == jnp.bfloat16
    assert jnp.allclose(c_bf16.astype(jnp.float32),
                        ref_logits(x, w, b).astype(jnp.float32),
                        atol=3e-2, rtol=3e-2), "bf16 logits mismatch"

    print("KERNEL_OK")
</pallas_src>

<mosaic_0001>
module attributes {stable_mosaic.version = 11 : i64} {
  func.func @_classifier_kernel(%arg0: i32, %arg1: i32, %arg2: memref<16x32xf32, #tpu.memory_space<vmem>>, %arg3: memref<32x8xf32, #tpu.memory_space<vmem>>, %arg4: memref<1x8xf32, #tpu.memory_space<vmem>>, %arg5: memref<16x8xf32, #tpu.memory_space<vmem>>) attributes {dimension_semantics = [#tpu.dimension_semantics<parallel>, #tpu.dimension_semantics<parallel>], iteration_bounds = array<i64: 1, 1>, scalar_prefetch = 0 : i64, scratch_operands = 0 : i64, tpu.core_type = #tpu.core_type<tc>, window_params = [{transform_indices = @transform_0, window_bounds = array<i64: 16, 32>}, {pipeline_mode = #tpu.pipeline_mode<synchronous>, transform_indices = @transform_1, window_bounds = array<i64: 32, 8>}, {pipeline_mode = #tpu.pipeline_mode<synchronous>, transform_indices = @transform_2, window_bounds = array<i64: 1, 8>}, {transform_indices = @transform_3, window_bounds = array<i64: 16, 8>}]} {
    %c0 = arith.constant 0 : index
    %c0_0 = arith.constant 0 : index
    %0 = vector.load %arg2[%c0, %c0_0] : memref<16x32xf32, #tpu.memory_space<vmem>>, vector<16x32xf32>
    %c0_1 = arith.constant 0 : index
    %c0_2 = arith.constant 0 : index
    %1 = vector.load %arg3[%c0_1, %c0_2] : memref<32x8xf32, #tpu.memory_space<vmem>>, vector<32x8xf32>
    %cst = arith.constant dense<0.000000e+00> : vector<16x8xf32>
    %2 = tpu.matmul %0, %1, %cst {dimension_numbers = #tpu.dot_dimension_numbers<[1], [0], [0], [1], [0, 0, 1, 1], [], []>} : vector<16x32xf32>, vector<32x8xf32>, vector<16x8xf32> -> vector<16x8xf32>
    %c0_3 = arith.constant 0 : index
    %c0_4 = arith.constant 0 : index
    %3 = vector.load %arg4[%c0_3, %c0_4] : memref<1x8xf32, #tpu.memory_space<vmem>>, vector<1x8xf32>
    %4 = vector.broadcast %3 : vector<1x8xf32> to vector<16x8xf32>
    %5 = arith.addf %2, %4 : vector<16x8xf32>
    %c0_5 = arith.constant 0 : index
    %c0_6 = arith.constant 0 : index
    %6 = vector.load %arg5[%c0_5, %c0_6] : memref<16x8xf32, #tpu.memory_space<vmem>>, vector<16x8xf32>
    tpu.vector_store %arg5[%c0_5, %c0_6], %5 {strides = array<i32>} : memref<16x8xf32, #tpu.memory_space<vmem>>, vector<16x8xf32>,
    return
  }
  func.func @transform_0(%arg0: i32, %arg1: i32) -> (i32, i32) {
    %c0_i32 = arith.constant 0 : i32
    %c0_i32_0 = arith.constant 0 : i32
    return %arg0, %c0_i32 : i32, i32
  }
  func.func @transform_1(%arg0: i32, %arg1: i32) -> (i32, i32) {
    %c0_i32 = arith.constant 0 : i32
    %c0_i32_0 = arith.constant 0 : i32
    return %c0_i32, %arg1 : i32, i32
  }
  func.func @transform_2(%arg0: i32, %arg1: i32) -> (i32, i32) {
    %c0_i32 = arith.constant 0 : i32
    %c0_i32_0 = arith.constant 0 : i32
    return %c0_i32, %arg1 : i32, i32
  }
  func.func @transform_3(%arg0: i32, %arg1: i32) -> (i32, i32) {
    %c0_i32 = arith.constant 0 : i32
    return %arg0, %arg1 : i32, i32
  }
}

module attributes {stable_mosaic.version = 11 : i64} {
  func.func @_classifier_kernel(%arg0: i32, %arg1: i32, %arg2: memref<16x32xf32, #tpu.memory_space<vmem>>, %arg3: memref<32x8xf32, #tpu.memory_space<vmem>>, %arg4: memref<1x8xf32, #tpu.memory_space<vmem>>, %arg5: memref<16x8xf32, #tpu.memory_space<vmem>>) attributes {dimension_semantics = [#tpu.dimension_semantics<parallel>, #tpu.dimension_semantics<parallel>], iteration_bounds = array<i64: 1, 1>, scalar_prefetch = 0 : i64, scratch_operands = 0 : i64, tpu.core_type = #tpu.core_type<tc>, window_params = [{transform_indices = @transform_0, window_bounds = array<i64: 16, 32>}, {transform_indices = @transform_1, window_bounds = array<i64: 32, 8>}, {transform_indices = @transform_2, window_bounds = array<i64: 1, 8>}, {transform_indices = @transform_3, window_bounds = array<i64: 16, 8>}]} {
    %c0 = arith.constant 0 : index
    %c0_0 = arith.constant 0 : index
    %0 = vector.load %arg2[%c0, %c0_0] : memref<16x32xf32, #tpu.memory_space<vmem>>, vector<16x32xf32>
    %c0_1 = arith.constant 0 : index
    %c0_2 = arith.constant 0 : index
    %1 = vector.load %arg3[%c0_1, %c0_2] : memref<32x8xf32, #tpu.memory_space<vmem>>, vector<32x8xf32>
    %cst = arith.constant dense<0.000000e+00> : vector<16x8xf32>
    %2 = tpu.matmul %0, %1, %cst {dimension_numbers = #tpu.dot_dimension_numbers<[1], [0], [0], [1], [0, 0, 1, 1], [], []>} : vector<16x32xf32>, vector<32x8xf32>, vector<16x8xf32> -> vector<16x8xf32>
    %c0_3 = arith.constant 0 : index
    %c0_4 = arith.constant 0 : index
    %3 = vector.load %arg4[%c0_3, %c0_4] : memref<1x8xf32, #tpu.memory_space<vmem>>, vector<1x8xf32>
    %4 = vector.broadcast %3 : vector<1x8xf32> to vector<16x8xf32>
    %5 = arith.addf %2, %4 : vector<16x8xf32>
    %c0_5 = arith.constant 0 : index
    %c0_6 = arith.constant 0 : index
    %6 = vector.load %arg5[%c0_5, %c0_6] : memref<16x8xf32, #tpu.memory_space<vmem>>, vector<16x8xf32>
    tpu.vector_store %arg5[%c0_5, %c0_6], %5 {strides = array<i32>} : memref<16x8xf32, #tpu.memory_space<vmem>>, vector<16x8xf32>,
    return
  }
  func.func @transform_0(%arg0: i32, %arg1: i32) -> (i32, i32) {
    %c0_i32 = arith.constant 0 : i32
    %c0_i32_0 = arith.constant 0 : i32
    return %arg0, %c0_i32 : i32, i32
  }
  func.func @transform_1(%arg0: i32, %arg1: i32) -> (i32, i32) {
    %c0_i32 = arith.constant 0 : i32
    %c0_i32_0 = arith.constant 0 : i32
    return %c0_i32, %arg1 : i32, i32
  }
  func.func @transform_2(%arg0: i32, %arg1: i32) -> (i32, i32) {
    %c0_i32 = arith.constant 0 : i32
    %c0_i32_0 = arith.constant 0 : i32
    return %c0_i32, %arg1 : i32, i32
  }
  func.func @transform_3(%arg0: i32, %arg1: i32) -> (i32, i32) {
    %c0_i32 = arith.constant 0 : i32
    return %arg0, %arg1 : i32, i32
  }
}

</mosaic_0001>

<llo_original>
// kernel: tpu_custom_call.1
$region0: #{tpu_custom_call.1}
  #allocation0 [shape = 'u32[]', space=smem, size = 0x4, offset = 0x4, fixed_abs, tag = 'smem constant byte address 0x4 - core index']
  #allocation1 [shape = 'u32[144,128]{1,0:T(1,128)}', space=vmem, size = 0x12000, scoped, tag = 'internal scratch']
  %s0 = inlined_call_operand.vmem [shape: f32[16,32], index: 0, kind: input, shape index: {}]
  %s1 = inlined_call_operand.vmem [shape: f32[32,8], index: 1, kind: input, shape index: {}]
  %s2 = inlined_call_operand.vmem [shape: f32[1,8], index: 2, kind: input, shape index: {}]
  %s3 = inlined_call_operand.vmem [shape: f32[16,8], index: 3, kind: output, shape index: {}]
  %s4 = sld [smem:[#allocation0]]
  $region22: #{tpu_custom_call.1} parent=0
    _
  %s6 = ssub.s32 1, %s4
  %s7 = scalar_select 0, %s6, %s4
  // Predicated region
  $region2: #{tpu_custom_call.1} parent=0 // pred_check
    _
  $region3: #{tpu_custom_call.1} parent=0 // pred_check_branch
    %9 = sbr.rel (0) target = $region5
  $region4: #{tpu_custom_call.1} parent=0 // pred_region
    _
  $region5: #{tpu_custom_call.1} parent=0 // pred_fallthru
    _
  // Predicated region
  $region6: #{tpu_custom_call.1} parent=0 // pred_check
    _
  $region7: #{tpu_custom_call.1} parent=0 // pred_check_branch
    %11 = sbr.rel (0) target = $region9
  $region8: #{tpu_custom_call.1} parent=0 // pred_region
    _
  $region9: #{tpu_custom_call.1} parent=0 // pred_fallthru
    _
  // Predicated region
  $region10: #{tpu_custom_call.1} parent=0 // pred_check
    _
  $region11: #{tpu_custom_call.1} parent=0 // pred_check_branch
    %13 = sbr.rel (0) target = $region13
  $region12: #{tpu_custom_call.1} parent=0 // pred_region
    _
  $region13: #{tpu_custom_call.1} parent=0 // pred_fallthru
    _
  %v14 = vld [vmem:[%s0] sm:$0xff]
  %v15 = vld [vmem:[%s0 + $0x8] sm:$0xff]
  %v16 = vld [vmem:[%s1] sm:$0xff]
  %v17 = vld [vmem:[%s1 + $0x8] sm:$0xff]
  %v18 = vld [vmem:[%s1 + $0x10] sm:$0xff]
  %v19 = vld [vmem:[%s1 + $0x18] sm:$0xff]
  %v20 = vld [vmem:[%s2] sm:$0x1]
  %v22 = vlaneseq
  %v23 = vshrl.u32 %v22, 7
  %v24 = vsub.s32 0, %v23
  %v25 = vrot.slane %v20, %v24
  %vm27 = vcmask 261120
  %v29 = vsel %vm27, %v14, 0
  %v32 = vsel %vm27, %v15, 0
  %34 = vmatprep.subr.mxu0 0.0
  %35 = vmatpush1.msra.mxu0 %v16
  %36 = vmatprep.subr.mxu0 0.0
  %37 = vmatpush1.msra.mxu0 %v17
  %38 = vmatprep.subr.mxu0 0.0
  %39 = vmatpush1.msra.mxu0 %v18
  %40 = vmatprep.subr.mxu0 0.0
  %41 = vmatpush1.msra.mxu0 %v19
  %42 = vmatprep.subr.mxu0 0.0
  %43 = vmatpush1.msra.mxu0 0.0
  %44 = vmatprep.subr.mxu0 0.0
  %45 = vmatpush1.msra.mxu0 0.0
  %46 = vmatprep.subr.mxu0 0.0
  %47 = vmatpush1.msra.mxu0 0.0
  %48 = vmatprep.subr.mxu0 0.0
  %49 = vmatpush1.msra.mxu0 0.0
  %50 = vmatprep.subr.mxu0 0.0
  %51 = vmatpush1.msra.mxu0 0.0
  %52 = vmatprep.subr.mxu0 0.0
  %53 = vmatpush1.msra.mxu0 0.0
  %54 = vmatprep.subr.mxu0 0.0
  %55 = vmatpush1.msra.mxu0 0.0
  %56 = vmatprep.subr.mxu0 0.0
  %57 = vmatpush1.msra.mxu0 0.0
  %58 = vmatprep.subr.mxu0 0.0
  %59 = vmatpush1.msra.mxu0 0.0
  %60 = vmatprep.subr.mxu0 0.0
  %61 = vmatpush1.msra.mxu0 0.0
  %62 = vmatprep.subr.mxu0 0.0
  %63 = vmatpush1.msra.mxu0 0.0
  %64 = vmatprep.subr.mxu0 0.0
  %65 = vmatpush1.msra.mxu0 0.0
  %66 = vmatprep.subr.mxu0 0.0
  %67 = vmatpush1.msra.mxu0 0.0
  %68 = vmatprep.subr.mxu0 0.0
  %69 = vmatpush1.msra.mxu0 0.0
  %70 = vmatprep.subr.mxu0 0.0
  %71 = vmatpush1.msra.mxu0 0.0
  %72 = vmatprep.subr.mxu0 0.0
  %73 = vmatpush1.msra.mxu0 0.0
  %74 = vmatprep.subr.mxu0 0.0
  %75 = vmatpush1.msra.mxu0 0.0
  %76 = vmatprep.subr.mxu0 0.0
  %77 = vmatpush1.msra.mxu0 0.0
  %78 = vmatprep.subr.mxu0 0.0
  %79 = vmatpush1.msra.mxu0 0.0
  %80 = vmatprep.subr.mxu0 0.0
  %81 = vmatpush1.msra.mxu0 0.0
  %82 = vmatprep.subr.mxu0 0.0
  %83 = vmatpush1.msra.mxu0 0.0
  %84 = vmatprep.subr.mxu0 0.0
  %85 = vmatpush1.msra.mxu0 0.0
  %86 = vmatprep.subr.mxu0 0.0
  %87 = vmatpush1.msra.mxu0 0.0
  %88 = vmatprep.subr.mxu0 0.0
  %89 = vmatpush1.msra.mxu0 0.0
  %90 = vmatprep.subr.mxu0 0.0
  %91 = vmatpush1.msra.mxu0 0.0
  %92 = vmatprep.subr.mxu0 0.0
  %93 = vmatpush1.msra.mxu0 0.0
  %94 = vmatprep.subr.mxu0 0.0
  %95 = vmatpush1.msra.mxu0 0.0
  %96 = vmatprep.subr.mxu0 0.0
  %97 = vmatpush1.msra.mxu0 0.0
  %98 = vmatprep.mubr.f32.mxu0 0.0
  %99 = vmatmul.mubr.f32.gmra.mrb[0].mxu0 %v29
  %v100 = vpop.f32.mrb[0].mxu0
  %v101 = vadd.f32 %v25, %v100
  %v102 = vpop.f32.mrb[0].mxu0
  %103 = vmatprep.mubr.f32.mxu0 0.0
  %104 = vmatmul.mubr.f32.gmra.mrb[0].mxu0 %v32
  %v105 = vpop.f32.mrb[0].mxu0
  %v106 = vadd.f32 %v25, %v105
  %v107 = vpop.f32.mrb[0].mxu0
  %108 = vdwg.mxu0
  %vm109 = vcmask 64512
  %110 = vst.msk [vmem:[%s3] sm:$0xff] %vm109, %v101
  %111 = vst.msk [vmem:[%s3 + $0x8] sm:$0xff] %vm109, %v106
  // Predicated region
  $region14: #{tpu_custom_call.1} parent=0 // pred_check
    _
  $region15: #{tpu_custom_call.1} parent=0 // pred_check_branch
    %113 = sbr.rel (0) target = $region17
  $region16: #{tpu_custom_call.1} parent=0 // pred_region
    _
  $region17: #{tpu_custom_call.1} parent=0 // pred_fallthru
    _
  // Predicated region
  $region18: #{tpu_custom_call.1} parent=0 // pred_check
    _
  $region19: #{tpu_custom_call.1} parent=0 // pred_check_branch
    %115 = sbr.rel (0) target = $region21
  $region20: #{tpu_custom_call.1} parent=0 // pred_region
    _
  $region21: #{tpu_custom_call.1} parent=0 // pred_fallthru
    _

// kernel: tpu_custom_call.1
$region0: #{tpu_custom_call.1}
  #allocation0 [shape = 'u32[]', space=smem, size = 0x4, offset = 0x4, fixed_abs, tag = 'smem constant byte address 0x4 - core index']
  #allocation1 [shape = 'u32[144,128]{1,0:T(1,128)}', space=vmem, size = 0x12000, scoped, tag = 'internal scratch']
  %s0 = inlined_call_operand.vmem [shape: f32[16,32], index: 0, kind: input, shape index: {}]
  %s1 = inlined_call_operand.vmem [shape: f32[32,8], index: 1, kind: input, shape index: {}]
  %s2 = inlined_call_operand.vmem [shape: f32[1,8], index: 2, kind: input, shape index: {}]
  %s3 = inlined_call_operand.vmem [shape: f32[16,8], index: 3, kind: output, shape index: {}]
  %s4 = sld [smem:[#allocation0]]
  $region22: #{tpu_custom_call.1} parent=0
    _
  %s6 = ssub.s32 1, %s4
  %s7 = scalar_select 0, %s6, %s4
  // Predicated region
  $region2: #{tpu_custom_call.1} parent=0 // pred_check
    _
  $region3: #{tpu_custom_call.1} parent=0 // pred_check_branch
    %9 = sbr.rel (0) target = $region5
  $region4: #{tpu_custom_call.1} parent=0 // pred_region
    _
  $region5: #{tpu_custom_call.1} parent=0 // pred_fallthru
    _
  // Predicated region
  $region6: #{tpu_custom_call.1} parent=0 // pred_check
    _
  $region7: #{tpu_custom_call.1} parent=0 // pred_check_branch
    %11 = sbr.rel (0) target = $region9
  $region8: #{tpu_custom_call.1} parent=0 // pred_region
    _
  $region9: #{tpu_custom_call.1} parent=0 // pred_fallthru
    _
  // Predicated region
  $region10: #{tpu_custom_call.1} parent=0 // pred_check
    _
  $region11: #{tpu_custom_call.1} parent=0 // pred_check_branch
    %13 = sbr.rel (0) target = $region13
  $region12: #{tpu_custom_call.1} parent=0 // pred_region
    _
  $region13: #{tpu_custom_call.1} parent=0 // pred_fallthru
    _
  %v14 = vld [vmem:[%s0] sm:$0xff]
  %v15 = vld [vmem:[%s0 + $0x8] sm:$0xff]
  %v16 = vld [vmem:[%s1] sm:$0xff]
  %v17 = vld [vmem:[%s1 + $0x8] sm:$0xff]
  %v18 = vld [vmem:[%s1 + $0x10] sm:$0xff]
  %v19 = vld [vmem:[%s1 + $0x18] sm:$0xff]
  %v20 = vld [vmem:[%s2] sm:$0x1]
  %v22 = vlaneseq
  %v23 = vshrl.u32 %v22, 7
  %v24 = vsub.s32 0, %v23
  %v25 = vrot.slane %v20, %v24
  %vm27 = vcmask 261120
  %v29 = vsel %vm27, %v14, 0
  %v32 = vsel %vm27, %v15, 0
  %34 = vmatprep.subr.mxu0 0.0
  %35 = vmatpush1.msra.mxu0 %v16
  %36 = vmatprep.subr.mxu0 0.0
  %37 = vmatpush1.msra.mxu0 %v17
  %38 = vmatprep.subr.mxu0 0.0
  %39 = vmatpush1.msra.mxu0 %v18
  %40 = vmatprep.subr.mxu0 0.0
  %41 = vmatpush1.msra.mxu0 %v19
  %42 = vmatprep.subr.mxu0 0.0
  %43 = vmatpush1.msra.mxu0 0.0
  %44 = vmatprep.subr.mxu0 0.0
  %45 = vmatpush1.msra.mxu0 0.0
  %46 = vmatprep.subr.mxu0 0.0
  %47 = vmatpush1.msra.mxu0 0.0
  %48 = vmatprep.subr.mxu0 0.0
  %49 = vmatpush1.msra.mxu0 0.0
  %50 = vmatprep.subr.mxu0 0.0
  %51 = vmatpush1.msra.mxu0 0.0
  %52 = vmatprep.subr.mxu0 0.0
  %53 = vmatpush1.msra.mxu0 0.0
  %54 = vmatprep.subr.mxu0 0.0
  %55 = vmatpush1.msra.mxu0 0.0
  %56 = vmatprep.subr.mxu0 0.0
  %57 = vmatpush1.msra.mxu0 0.0
  %58 = vmatprep.subr.mxu0 0.0
  %59 = vmatpush1.msra.mxu0 0.0
  %60 = vmatprep.subr.mxu0 0.0
  %61 = vmatpush1.msra.mxu0 0.0
  %62 = vmatprep.subr.mxu0 0.0
  %63 = vmatpush1.msra.mxu0 0.0
  %64 = vmatprep.subr.mxu0 0.0
  %65 = vmatpush1.msra.mxu0 0.0
  %66 = vmatprep.subr.mxu0 0.0
  %67 = vmatpush1.msra.mxu0 0.0
  %68 = vmatprep.subr.mxu0 0.0
  %69 = vmatpush1.msra.mxu0 0.0
  %70 = vmatprep.subr.mxu0 0.0
  %71 = vmatpush1.msra.mxu0 0.0
  %72 = vmatprep.subr.mxu0 0.0
  %73 = vmatpush1.msra.mxu0 0.0
  %74 = vmatprep.subr.mxu0 0.0
  %75 = vmatpush1.msra.mxu0 0.0
  %76 = vmatprep.subr.mxu0 0.0
  %77 = vmatpush1.msra.mxu0 0.0
  %78 = vmatprep.subr.mxu0 0.0
  %79 = vmatpush1.msra.mxu0 0.0
  %80 = vmatprep.subr.mxu0 0.0
  %81 = vmatpush1.msra.mxu0 0.0
  %82 = vmatprep.subr.mxu0 0.0
  %83 = vmatpush1.msra.mxu0 0.0
  %84 = vmatprep.subr.mxu0 0.0
  %85 = vmatpush1.msra.mxu0 0.0
  %86 = vmatprep.subr.mxu0 0.0
  %87 = vmatpush1.msra.mxu0 0.0
  %88 = vmatprep.subr.mxu0 0.0
  %89 = vmatpush1.msra.mxu0 0.0
  %90 = vmatprep.subr.mxu0 0.0
  %91 = vmatpush1.msra.mxu0 0.0
  %92 = vmatprep.subr.mxu0 0.0
  %93 = vmatpush1.msra.mxu0 0.0
  %94 = vmatprep.subr.mxu0 0.0
  %95 = vmatpush1.msra.mxu0 0.0
  %96 = vmatprep.subr.mxu0 0.0
  %97 = vmatpush1.msra.mxu0 0.0
  %98 = vmatprep.mubr.f32.mxu0 0.0
  %99 = vmatmul.mubr.f32.gmra.mrb[0].mxu0 %v29
  %v100 = vpop.f32.mrb[0].mxu0
  %v101 = vadd.f32 %v25, %v100
  %v102 = vpop.f32.mrb[0].mxu0
  %103 = vmatprep.mubr.f32.mxu0 0.0
  %104 = vmatmul.mubr.f32.gmra.mrb[0].mxu0 %v32
  %v105 = vpop.f32.mrb[0].mxu0
  %v106 = vadd.f32 %v25, %v105
  %v107 = vpop.f32.mrb[0].mxu0
  %108 = vdwg.mxu0
  %vm109 = vcmask 64512
  %110 = vst.msk [vmem:[%s3] sm:$0xff] %vm109, %v101
  %111 = vst.msk [vmem:[%s3 + $0x8] sm:$0xff] %vm109, %v106
  // Predicated region
  $region14: #{tpu_custom_call.1} parent=0 // pred_check
    _
  $region15: #{tpu_custom_call.1} parent=0 // pred_check_branch
    %113 = sbr.rel (0) target = $region17
  $region16: #{tpu_custom_call.1} parent=0 // pred_region
    _
  $region17: #{tpu_custom_call.1} parent=0 // pred_fallthru
    _
  // Predicated region
  $region18: #{tpu_custom_call.1} parent=0 // pred_check
    _
  $region19: #{tpu_custom_call.1} parent=0 // pred_check_branch
    %115 = sbr.rel (0) target = $region21
  $region20: #{tpu_custom_call.1} parent=0 // pred_region
    _
  $region21: #{tpu_custom_call.1} parent=0 // pred_fallthru
    _

</llo_original>
